<compile_context>
chip_gen: v7x
topology: tpu7x:2x2x1
jax: 0.10.0
libtpu: 0.0.40
codegen_flags: <defaults>
</compile_context>

<pallas_src>
import jax
import jax.numpy as jnp
from jax.experimental import pallas as pl
from jax.experimental.pallas import tpu as pltpu


def _round_up(v, m):
    return ((v + m - 1) // m) * m


def _cdiv(a, b):
    return -(-a // b)


# ----------------------------- kernels --------------------------------------


def _proj_kernel_resident(x_ref, w_ref, b_ref, o_ref):
    # x_ref: (tm, K)      bf16 patch-matrix tile
    # w_ref: (K, e_pad)   bf16 weight (resident: constant block index -> 1 DMA)
    # b_ref: (1, e_pad)   f32 bias
    # o_ref: (tm, e_pad)  output tile in the final dtype
    acc = jnp.dot(x_ref[...], w_ref[...], preferred_element_type=jnp.float32)
    o_ref[...] = (acc + b_ref[...]).astype(o_ref.dtype)


def _proj_kernel_ktiled(x_ref, w_ref, b_ref, o_ref, acc_ref):
    # Fallback when the weight does not fit resident in VMEM.
    k = pl.program_id(1)

    @pl.when(k == 0)
    def _():
        acc_ref[...] = jnp.zeros_like(acc_ref)

    acc_ref[...] += jnp.dot(x_ref[...], w_ref[...],
                            preferred_element_type=jnp.float32)

    @pl.when(k == pl.num_programs(1) - 1)
    def _():
        o_ref[...] = (acc_ref[...] + b_ref[...]).astype(o_ref.dtype)


# ----------------------------- wrapper ---------------------------------------


def _pick_tm(M, per_row_bytes, avail_bytes):
    """Pick the M tile: >=2 blocks (v7x megacore), <=~1024 rows, fits budget."""
    if M <= 16:
        return M  # single full-dim block (exempt from divisibility)
    target = _round_up(_cdiv(M, 2 * max(1, _cdiv(M, 1024))), 16)
    target = max(16, min(target, 1024))
    tm_max = max(16, (avail_bytes // max(per_row_bytes, 1)) // 16 * 16)
    return min(target, tm_max)


def patch_embedding_3d(x, weight, bias, patch_size, *,
                       out_dtype=None, compute_dtype=jnp.bfloat16,
                       vmem_budget_bytes=28 * 1024 * 1024):
    """Pallas implementation of PatchEmbedding3D.forward.

    Args:
      x:      (B, C, D, H, W)           (NCDHW, same as PyTorch)
      weight: (E, C, p, p, p)           (PyTorch Conv3d weight layout)
      bias:   (E,)
      patch_size: int p (D, H, W divisible by p)

    Returns:
      (B, N, E) with N = (D//p)*(H//p)*(W//p), dtype = x.dtype (or out_dtype).
    """
    p = patch_size
    B, C, D, H, W = x.shape
    E = weight.shape[0]
    assert D % p == 0 and H % p == 0 and W % p == 0
    Dp, Hp, Wp = D // p, H // p, W // p
    N = Dp * Hp * Wp
    K = C * p * p * p
    M = B * N
    out_dtype = x.dtype if out_dtype is None else out_dtype
    cdt = jnp.dtype(compute_dtype).itemsize
    odt = jnp.dtype(out_dtype).itemsize

    # ---- patch gather (XLA side): NCDHW -> (M, K), patch order (C, pd, ph, pw).
    # Cast to the MXU compute dtype first so this pass moves half the bytes.
    xc = x.astype(compute_dtype)
    xp = xc.reshape(B, C, Dp, p, Hp, p, Wp, p)
    xp = jnp.transpose(xp, (0, 2, 4, 6, 1, 3, 5, 7)).reshape(M, K)

    # Conv3d weight (E, C, p, p, p) -> (E, K) -> pre-transpose to (K, E) once
    # (jit-time constant for real models) so the kernel does a plain A @ B on
    # the MXU with no per-tile XLU transpose. Pad E to a lane-dense multiple
    # of 128 (unmasked vst, full MXU output columns); stripped in the wrapper.
    e_pad = _round_up(E, 128)
    w2d = jnp.pad(weight.reshape(E, K).T.astype(compute_dtype),
                  ((0, 0), (0, e_pad - E)))
    b2d = jnp.pad(bias.astype(jnp.float32).reshape(1, E),
                  ((0, 0), (0, e_pad - E)))

    weight_bytes = K * e_pad * cdt
    # Keep the whole weight resident when (double-buffer-pessimistic) 2x its
    # size fits comfortably; true for essentially all patch-embed configs.
    resident_ok = (2 * weight_bytes) <= 16 * 1024 * 1024

    if resident_ok:
        per_row = 2 * K * cdt + 2 * e_pad * odt          # x + out, double-buffered
        tm = _pick_tm(M, per_row, vmem_budget_bytes - 2 * weight_bytes)
        grid = (_cdiv(M, tm),)

        vmem_needed = (2 * tm * K * cdt          # double-buffered patch tiles
                       + 2 * weight_bytes        # weight (pessimistically 2x)
                       + 2 * e_pad * 4           # bias
                       + 2 * tm * e_pad * odt)   # double-buffered output tiles
        vmem_limit = int(min(max(vmem_needed * 5 // 4 + (2 << 20), 16 << 20),
                             48 << 20))

        cost = pl.CostEstimate(
            flops=2 * M * K * e_pad,
            transcendentals=0,
            bytes_accessed=(M * K * cdt            # patches read once
                            + weight_bytes         # weight read once (resident)
                            + e_pad * 4            # bias
                            + M * e_pad * odt),    # output written once
        )

        out = pl.pallas_call(
            _proj_kernel_resident,
            out_shape=jax.ShapeDtypeStruct((M, e_pad), out_dtype),
            grid_spec=pltpu.PrefetchScalarGridSpec(
                num_scalar_prefetch=0,
                grid=grid,
                in_specs=[
                    pl.BlockSpec((tm, K), lambda i: (i, 0)),       # patches
                    pl.BlockSpec((K, e_pad), lambda i: (0, 0)),    # weight (resident)
                    pl.BlockSpec((1, e_pad), lambda i: (0, 0)),    # bias
                ],
                out_specs=pl.BlockSpec((tm, e_pad), lambda i: (i, 0)),
            ),
            compiler_params=pltpu.CompilerParams(
                dimension_semantics=("parallel",),
                vmem_limit_bytes=vmem_limit,
            ),
            cost_estimate=cost,
        )(xp, w2d, b2d)
    else:
        # Fallback: stream the weight in K tiles with an f32 accumulator.
        tk = 1024                                   # conservative for v7x 64 MiB
        k_pad = _round_up(K, tk)
        xp = jnp.pad(xp, ((0, 0), (0, k_pad - K)))          # zero K-pad (benign)
        w2d = jnp.pad(w2d, ((0, k_pad - K), (0, 0)))
        per_row = 2 * tk * cdt + 2 * e_pad * odt + e_pad * 4
        avail = vmem_budget_bytes - 2 * tk * e_pad * cdt - 2 * e_pad * 4
        tm = _pick_tm(M, per_row, avail)
        grid_m = _cdiv(M, tm)
        grid = (grid_m, k_pad // tk)

        vmem_needed = (2 * tm * tk * cdt + 2 * tk * e_pad * cdt
                       + 2 * e_pad * 4 + 2 * tm * e_pad * odt
                       + tm * e_pad * 4)
        vmem_limit = int(min(max(vmem_needed * 5 // 4 + (2 << 20), 16 << 20),
                             48 << 20))

        cost = pl.CostEstimate(
            flops=2 * M * k_pad * e_pad,
            transcendentals=0,
            bytes_accessed=(M * k_pad * cdt
                            + grid_m * k_pad * e_pad * cdt   # weight per M tile
                            + e_pad * 4 + M * e_pad * odt),
        )

        out = pl.pallas_call(
            _proj_kernel_ktiled,
            out_shape=jax.ShapeDtypeStruct((M, e_pad), out_dtype),
            grid_spec=pltpu.PrefetchScalarGridSpec(
                num_scalar_prefetch=0,
                grid=grid,
                in_specs=[
                    pl.BlockSpec((tm, tk), lambda i, k: (i, k)),
                    pl.BlockSpec((tk, e_pad), lambda i, k: (k, 0)),
                    pl.BlockSpec((1, e_pad), lambda i, k: (0, 0)),
                ],
                out_specs=pl.BlockSpec((tm, e_pad), lambda i, k: (i, 0)),
                scratch_shapes=[pltpu.VMEM((tm, e_pad), jnp.float32)],
            ),
            compiler_params=pltpu.CompilerParams(
                dimension_semantics=("parallel", "arbitrary"),
                vmem_limit_bytes=vmem_limit,
            ),
            cost_estimate=cost,
        )(xp, w2d, b2d)

    # Strip the lane padding and restore (B, N, E) == flatten(2).transpose(1, 2).
    return out[:, :E].reshape(B, N, E)


if __name__ == "__main__":
    # Small shapes consistent with the module's forward pass.
    B, C, D, H, W = 2, 4, 16, 16, 16
    patch_size = 4
    embed_dim = 32

    key = jax.random.PRNGKey(0)
    kx, kw, kb = jax.random.split(key, 3)

    x = jax.random.normal(kx, (B, C, D, H, W), dtype=jnp.float32)
    weight = jax.random.normal(
        kw, (embed_dim, C, patch_size, patch_size, patch_size),
        dtype=jnp.float32) * 0.02
    bias = jax.random.normal(kb, (embed_dim,), dtype=jnp.float32) * 0.02

    fwd = jax.jit(lambda xx, ww, bb: patch_embedding_3d(xx, ww, bb, patch_size))
    out = jax.block_until_ready(fwd(x, weight, bias))

    # Reference: Conv3d (stride == kernel) on bf16-rounded inputs (matches the
    # kernel's bf16 x bf16 -> f32 MXU math), then flatten + transpose.
    xr = x.astype(jnp.bfloat16).astype(jnp.float32)
    wr = weight.astype(jnp.bfloat16).astype(jnp.float32)
    ref = jax.lax.conv_general_dilated(
        xr, wr,
        window_strides=(patch_size,) * 3,
        padding="VALID",
        dimension_numbers=("NCDHW", "OIDHW", "NCDHW"),
    ) + bias.reshape(1, embed_dim, 1, 1, 1)
    ref = ref.reshape(B, embed_dim, -1).transpose(0, 2, 1)

    N = (D // patch_size) * (H // patch_size) * (W // patch_size)
    assert out.shape == (B, N, embed_dim), out.shape
    assert out.dtype == x.dtype, out.dtype
    assert jnp.allclose(out, ref, atol=2e-3, rtol=2e-3), \
        float(jnp.max(jnp.abs(out - ref)))

    print("KERNEL_OK")
</pallas_src>

<mosaic_0001>
module attributes {stable_mosaic.version = 11 : i64} {
  func.func @_proj_kernel_resident(%arg0: i32, %arg1: memref<64x256xbf16, #tpu.memory_space<vmem>>, %arg2: memref<256x128xbf16, #tpu.memory_space<vmem>>, %arg3: memref<1x128xf32, #tpu.memory_space<vmem>>, %arg4: memref<64x128xf32, #tpu.memory_space<vmem>>) attributes {dimension_semantics = [#tpu.dimension_semantics<parallel>], iteration_bounds = array<i64: 2>, scalar_prefetch = 0 : i64, scratch_operands = 0 : i64, tpu.core_type = #tpu.core_type<tc>, window_params = [{transform_indices = @transform_0, window_bounds = array<i64: 64, 256>}, {pipeline_mode = #tpu.pipeline_mode<synchronous>, transform_indices = @transform_1, window_bounds = array<i64: 256, 128>}, {pipeline_mode = #tpu.pipeline_mode<synchronous>, transform_indices = @transform_2, window_bounds = array<i64: 1, 128>}, {transform_indices = @transform_3, window_bounds = array<i64: 64, 128>}]} {
    %c0 = arith.constant 0 : index
    %c0_0 = arith.constant 0 : index
    %0 = vector.load %arg1[%c0, %c0_0] : memref<64x256xbf16, #tpu.memory_space<vmem>>, vector<64x256xbf16>
    %c0_1 = arith.constant 0 : index
    %c0_2 = arith.constant 0 : index
    %1 = vector.load %arg2[%c0_1, %c0_2] : memref<256x128xbf16, #tpu.memory_space<vmem>>, vector<256x128xbf16>
    %cst = arith.constant dense<0.000000e+00> : vector<64x128xf32>
    %2 = tpu.matmul %0, %1, %cst {dimension_numbers = #tpu.dot_dimension_numbers<[1], [0], [0], [1], [0, 0, 1, 1], [], []>} : vector<64x256xbf16>, vector<256x128xbf16>, vector<64x128xf32> -> vector<64x128xf32>
    %c0_3 = arith.constant 0 : index
    %c0_4 = arith.constant 0 : index
    %3 = vector.load %arg3[%c0_3, %c0_4] : memref<1x128xf32, #tpu.memory_space<vmem>>, vector<1x128xf32>
    %4 = vector.broadcast %3 : vector<1x128xf32> to vector<64x128xf32>
    %5 = arith.addf %2, %4 : vector<64x128xf32>
    %c0_5 = arith.constant 0 : index
    %c0_6 = arith.constant 0 : index
    %6 = vector.load %arg4[%c0_5, %c0_6] : memref<64x128xf32, #tpu.memory_space<vmem>>, vector<64x128xf32>
    tpu.vector_store %arg4[%c0_5, %c0_6], %5 {strides = array<i32>} : memref<64x128xf32, #tpu.memory_space<vmem>>, vector<64x128xf32>,
    return
  }
  func.func @transform_0(%arg0: i32) -> (i32, i32) {
    %c0_i32 = arith.constant 0 : i32
    %c0_i32_0 = arith.constant 0 : i32
    return %arg0, %c0_i32 : i32, i32
  }
  func.func @transform_1(%arg0: i32) -> (i32, i32) {
    %c0_i32 = arith.constant 0 : i32
    %c0_i32_0 = arith.constant 0 : i32
    %c0_i32_1 = arith.constant 0 : i32
    return %c0_i32, %c0_i32_0 : i32, i32
  }
  func.func @transform_2(%arg0: i32) -> (i32, i32) {
    %c0_i32 = arith.constant 0 : i32
    %c0_i32_0 = arith.constant 0 : i32
    %c0_i32_1 = arith.constant 0 : i32
    return %c0_i32, %c0_i32_0 : i32, i32
  }
  func.func @transform_3(%arg0: i32) -> (i32, i32) {
    %c0_i32 = arith.constant 0 : i32
    %c0_i32_0 = arith.constant 0 : i32
    return %arg0, %c0_i32 : i32, i32
  }
}

</mosaic_0001>

<llo_original>
// kernel: _lambda_.1
$region0: #{_lambda_.1}
  #allocation0 [shape = 'u32[]', space=smem, size = 0x4, offset = 0x4, fixed_abs, tag = 'smem constant byte address 0x4 - core index']
  #allocation1 [shape = 'u32[144,128]{1,0:T(1,128)}', space=vmem, size = 0x12000, scoped, tag = 'internal scratch']
  %s0 = inlined_call_operand.vmem [shape: bf16[128,256], index: 0, kind: input, shape index: {}]
  %s1 = inlined_call_operand.vmem [shape: bf16[256,128], index: 1, kind: input, shape index: {}]
  %s2 = inlined_call_operand.vmem [shape: f32[1,128], index: 2, kind: input, shape index: {}]
  %s3 = inlined_call_operand.vmem [shape: f32[128,128], index: 3, kind: output, shape index: {}]
  %s4 = sld [smem:[#allocation0]]
  $region45: #{_lambda_.1} parent=0
    _
  %s6 = ssub.s32 1, %s4
  %s7 = scalar_select 0, %s6, %s4
  loop: start=0, step=1, limit=4
  $region2: #{_lambda_.1} parent=0 // loop_pre_header
    _
  $region3: #{_lambda_.1} parent=0 // loop_header
    %s9 = sphi 0, %s13
    %p10 = scmp.ge.s32.totalorder %s9, 4
    %s19 = sphi 0, %s21
    %s22 = sphi 0, %s19
    %s23 = sphi 0, %s22
    %s39 = sphi 0, %s23
    %s43 = sphi 0, %s43
    %s45 = sphi 0, %s43
    %s46 = sphi 0, %s45
    %s60 = sphi 0, %s46
    %s64 = sphi 0, %s64
    %s66 = sphi 0, %s64
    %s67 = sphi 0, %s66
    %s81 = sphi 0, %s67
    %s87 = sphi 0, %s89
    %s90 = sphi 0, %s87
    %s91 = sphi 0, %s90
    %s107 = sphi 0, %s91
  $region4: #{_lambda_.1} parent=0 // loop_header_branch
    %12 = sbr.rel (%p10) target = $region8
  $region5: #{_lambda_.1} parent=0 // loop_body
    %s14 = ssub.s32 %s9, 1
    %s15 = ssub.s32 %s9, 2
    %s16 = sadd.s32 %s9, 1
    %s17 = ssub.s32 %s9, %s16
    %p18 = scmp.eq.s32.totalorder %s17, 0
    %s20 = sadd.s32 %s19, 1
    %s21 = scalar_select %p18, %s19, %s20
    %p24 = pneg %p18
    %p25 = scmp.eq.s32.totalorder %s9, 1
    %p26 = por %p24, %p25
    %p27 = scmp.ne.s32.totalorder %s19, %s22
    %p28 = scmp.eq.s32.totalorder %s9, 0
    %p29 = por %p27, %p28
    %p30 = scmp.ne.s32.totalorder %s19, %s22
    %p31 = scmp.eq.s32.totalorder %s14, 1
    %p32 = por %p30, %p31
    %p33 = scmp.ne.s32.totalorder %s22, %s23
    %p34 = scmp.eq.s32.totalorder %s14, 0
    %p35 = por %p33, %p34
    %p36 = scmp.ne.s32.totalorder %s22, %s23
    %p37 = scmp.eq.s32.totalorder %s15, 1
    %p38 = por %p36, %p37
    %p40 = scmp.ne.s32.totalorder %s23, %s39
    %p41 = scmp.eq.s32.totalorder %s15, 0
    %p42 = por %p40, %p41
    %s44 = sadd.s32 %s43, 1
    %p47 = scmp.eq.s32.totalorder %s9, 1
    %p48 = scmp.ne.s32.totalorder %s43, %s45
    %p49 = scmp.eq.s32.totalorder %s9, 0
    %p50 = por %p48, %p49
    %p51 = scmp.ne.s32.totalorder %s43, %s45
    %p52 = scmp.eq.s32.totalorder %s14, 1
    %p53 = por %p51, %p52
    %p54 = scmp.ne.s32.totalorder %s45, %s46
    %p55 = scmp.eq.s32.totalorder %s14, 0
    %p56 = por %p54, %p55
    %p57 = scmp.ne.s32.totalorder %s45, %s46
    %p58 = scmp.eq.s32.totalorder %s15, 1
    %p59 = por %p57, %p58
    %p61 = scmp.ne.s32.totalorder %s46, %s60
    %p62 = scmp.eq.s32.totalorder %s15, 0
    %p63 = por %p61, %p62
    %s65 = sadd.s32 %s64, 1
    %p68 = scmp.eq.s32.totalorder %s9, 1
    %p69 = scmp.ne.s32.totalorder %s64, %s66
    %p70 = scmp.eq.s32.totalorder %s9, 0
    %p71 = por %p69, %p70
    %p72 = scmp.ne.s32.totalorder %s64, %s66
    %p73 = scmp.eq.s32.totalorder %s14, 1
    %p74 = por %p72, %p73
    %p75 = scmp.ne.s32.totalorder %s66, %s67
    %p76 = scmp.eq.s32.totalorder %s14, 0
    %p77 = por %p75, %p76
    %p78 = scmp.ne.s32.totalorder %s66, %s67
    %p79 = scmp.eq.s32.totalorder %s15, 1
    %p80 = por %p78, %p79
    %p82 = scmp.ne.s32.totalorder %s67, %s81
    %p83 = scmp.eq.s32.totalorder %s15, 0
    %p84 = por %p82, %p83
    %s85 = ssub.s32 %s9, %s16
    %p86 = scmp.eq.s32.totalorder %s85, 0
    %s88 = sadd.s32 %s87, 1
    %s89 = scalar_select %p86, %s87, %s88
    %p92 = pneg %p86
    %p93 = scmp.eq.s32.totalorder %s9, 1
    %p94 = por %p92, %p93
    %p95 = scmp.ne.s32.totalorder %s87, %s90
    %p96 = scmp.eq.s32.totalorder %s9, 0
    %p97 = por %p95, %p96
    %p98 = scmp.ne.s32.totalorder %s87, %s90
    %p99 = scmp.eq.s32.totalorder %s14, 1
    %p100 = por %p98, %p99
    %p101 = scmp.ne.s32.totalorder %s90, %s91
    %p102 = scmp.eq.s32.totalorder %s14, 0
    %p103 = por %p101, %p102
    %p104 = scmp.ne.s32.totalorder %s90, %s91
    %p105 = scmp.eq.s32.totalorder %s15, 1
    %p106 = por %p104, %p105
    %p108 = scmp.ne.s32.totalorder %s91, %s107
    %p109 = scmp.eq.s32.totalorder %s15, 0
    %p110 = por %p108, %p109
    %p111 = scmp.le.s32.totalorder 1, %s9
    %p112 = scmp.lt.s32.totalorder %s9, 3
    %p113 = pnand %p111, %p112
    %p114 = pneg %p113
    // Predicated region
    $region9: #{_lambda_.1} parent=5 // pred_check
      _
    $region10: #{_lambda_.1} parent=5 // pred_check_branch
      %116 = sbr.rel (%p113) target = $region12
    $region11: #{_lambda_.1} parent=5 // pred_region
      %s117 = ssub.s32 %s9, 1
      // Predicated region
      $region13: #{_lambda_.1} parent=11 // pred_check
        %p118 = pneg %p56
      $region14: #{_lambda_.1} parent=11 // pred_check_branch
        %120 = sbr.rel (%p118) target = $region16
      $region15: #{_lambda_.1} parent=11 // pred_region
        _
      $region16: #{_lambda_.1} parent=11 // pred_fallthru
        _
      // Predicated region
      $region17: #{_lambda_.1} parent=11 // pred_check
        %p121 = pneg %p77
      $region18: #{_lambda_.1} parent=11 // pred_check_branch
        %123 = sbr.rel (%p121) target = $region20
      $region19: #{_lambda_.1} parent=11 // pred_region
        _
      $region20: #{_lambda_.1} parent=11 // pred_fallthru
        _
    $region12: #{_lambda_.1} parent=5 // pred_fallthru
      _
    %p124 = scmp.lt.s32.totalorder %s9, 2
    // Predicated region
    $region21: #{_lambda_.1} parent=5 // pred_check
      %p125 = pneg %p124
    $region22: #{_lambda_.1} parent=5 // pred_check_branch
      %127 = sbr.rel (%p125) target = $region24
    $region23: #{_lambda_.1} parent=5 // pred_region
      // Predicated region
      $region25: #{_lambda_.1} parent=23 // pred_check
        %p128 = pneg %p29
      $region26: #{_lambda_.1} parent=23 // pred_check_branch
        %130 = sbr.rel (%p128) target = $region28
      $region27: #{_lambda_.1} parent=23 // pred_region
        %s131 = smul.u32 8, %s9
        %p132 = scmp.lt.s32.totalorder %s131, 15
        %s133 = scalar_select %p132, %s131, 15
        %s134 = smul.addr %s133, 2
        %s135 = smul.addr %s134, 4
        %s136 = scalar_lea.vmem %s0, %s135
        %s137 = smul.u32 8, %s9
      $region28: #{_lambda_.1} parent=23 // pred_fallthru
        _
    $region24: #{_lambda_.1} parent=5 // pred_fallthru
      _
    %p138 = scmp.le.s32.totalorder 1, %s9
    %p139 = scmp.lt.s32.totalorder %s9, 3
    %p140 = pnand %p138, %p139
    %p141 = pneg %p140
    // Predicated region
    $region29: #{_lambda_.1} parent=5 // pred_check
      _
    $region30: #{_lambda_.1} parent=5 // pred_check_branch
      %143 = sbr.rel (%p140) target = $region32
    $region31: #{_lambda_.1} parent=5 // pred_region
      %s144 = ssub.s32 %s9, 1
      %s145 = smul.u32 8, %s14
      %p146 = scmp.lt.s32.totalorder %s145, 15
      %s147 = scalar_select %p146, %s145, 15
      %s148 = smul.addr %s147, 2
      %s149 = smul.addr %s148, 4
      %s150 = scalar_lea.vmem %s0, %s149
      %p151 = pneg %p35
      %p152 = pneg %p32
      %p153 = pneg %p56
      %p154 = pneg %p53
      %p155 = pneg %p77
      %p156 = pneg %p74
      %p157 = pneg %p103
      %p158 = pneg %p100
      %s159 = smul.u32 8, %s14
      %p160 = scmp.lt.s32.totalorder %s159, 15
      %s161 = scalar_select %p160, %s159, 15
      %s162 = smul.addr %s161, 8
      %s163 = scalar_lea.vmem %s3, %s162
      %s164 = smul.u32 8, %s14
      %p165 = scmp.lt.s32.totalorder %s164, 15
      %s166 = scalar_select %p165, %s164, 15
      %s167 = smul.addr %s166, 2
      %s168 = smul.addr %s167, 4
      %s169 = scalar_lea.vmem %s0, %s168
      %s170 = smul.u32 8, %s14
      %s171 = smul.u32 8, %s14
      %p172 = scmp.lt.s32.totalorder %s171, 15
      %s173 = scalar_select %p172, %s171, 15
      %s174 = smul.addr %s173, 8
      %s175 = scalar_lea.vmem %s3, %s174
      %s176 = smul.u32 8, %s14
      %v178 = vld [vmem:[%s169] sm:$0xff]
      %v179 = vld [vmem:[%s169 + $0x8] sm:$0xff]
      %v180 = vld [vmem:[%s169 + $0x10] sm:$0xff]
      %v181 = vld [vmem:[%s169 + $0x18] sm:$0xff]
      %v182 = vld [vmem:[%s169 + $0x20] sm:$0xff]
      %v183 = vld [vmem:[%s169 + $0x28] sm:$0xff]
      %v184 = vld [vmem:[%s169 + $0x30] sm:$0xff]
      %v185 = vld [vmem:[%s169 + $0x38] sm:$0xff]
      %v186 = vld [vmem:[%s1] sm:$0xf]
      %v187 = vld [vmem:[%s1 + $0x4] sm:$0xf]
      %v188 = vld [vmem:[%s1 + $0x8] sm:$0xf]
      %v189 = vld [vmem:[%s1 + $0xc] sm:$0xf]
      %v190 = vld [vmem:[%s1 + $0x10] sm:$0xf]
      %v191 = vld [vmem:[%s1 + $0x14] sm:$0xf]
      %v192 = vld [vmem:[%s1 + $0x18] sm:$0xf]
      %v193 = vld [vmem:[%s1 + $0x1c] sm:$0xf]
      %v194 = vld [vmem:[%s1 + $0x20] sm:$0xf]
      %v195 = vld [vmem:[%s1 + $0x24] sm:$0xf]
      %v196 = vld [vmem:[%s1 + $0x28] sm:$0xf]
      %v197 = vld [vmem:[%s1 + $0x2c] sm:$0xf]
      %v198 = vld [vmem:[%s1 + $0x30] sm:$0xf]
      %v199 = vld [vmem:[%s1 + $0x34] sm:$0xf]
      %v200 = vld [vmem:[%s1 + $0x38] sm:$0xf]
      %v201 = vld [vmem:[%s1 + $0x3c] sm:$0xf]
      %v202 = vld [vmem:[%s1 + $0x40] sm:$0xf]
      %v203 = vld [vmem:[%s1 + $0x44] sm:$0xf]
      %v204 = vld [vmem:[%s1 + $0x48] sm:$0xf]
      %v205 = vld [vmem:[%s1 + $0x4c] sm:$0xf]
      %v206 = vld [vmem:[%s1 + $0x50] sm:$0xf]
      %v207 = vld [vmem:[%s1 + $0x54] sm:$0xf]
      %v208 = vld [vmem:[%s1 + $0x58] sm:$0xf]
      %v209 = vld [vmem:[%s1 + $0x5c] sm:$0xf]
      %v210 = vld [vmem:[%s1 + $0x60] sm:$0xf]
      %v211 = vld [vmem:[%s1 + $0x64] sm:$0xf]
      %v212 = vld [vmem:[%s1 + $0x68] sm:$0xf]
      %v213 = vld [vmem:[%s1 + $0x6c] sm:$0xf]
      %v214 = vld [vmem:[%s1 + $0x70] sm:$0xf]
      %v215 = vld [vmem:[%s1 + $0x74] sm:$0xf]
      %v216 = vld [vmem:[%s1 + $0x78] sm:$0xf]
      %v217 = vld [vmem:[%s1 + $0x7c] sm:$0xf]
      %v218 = vld [vmem:[%s2] sm:$0x1]
      %v220 = vlaneseq
      %v221 = vshrl.u32 %v220, 7
      %v222 = vsub.s32 0, %v221
      %v223 = vrot.slane %v218, %v222
      %v233 = vunpack.c.l.b16 %v178
      %v234 = vunpack.c.h.b16 %v178
      %v235 = vunpack.c.l.b16 %v179
      %v236 = vunpack.c.h.b16 %v179
      %v237 = vunpack.c.l.b16 %v180
      %v238 = vunpack.c.h.b16 %v180
      %v239 = vunpack.c.l.b16 %v181
      %v240 = vunpack.c.h.b16 %v181
      %v241 = vunpack.c.l.b16 %v182
      %v242 = vunpack.c.h.b16 %v182
      %v243 = vunpack.c.l.b16 %v183
      %v244 = vunpack.c.h.b16 %v183
      %v245 = vunpack.c.l.b16 %v184
      %v246 = vunpack.c.h.b16 %v184
      %v247 = vunpack.c.l.b16 %v185
      %v248 = vunpack.c.h.b16 %v185
      %v249 = vpack.c.b16 %v235, %v233
      %v250 = vpack.c.b16 %v236, %v234
      %v251 = vpack.c.b16 %v239, %v237
      %v252 = vpack.c.b16 %v240, %v238
      %v253 = vpack.c.b16 %v243, %v241
      %v254 = vpack.c.b16 %v244, %v242
      %v255 = vpack.c.b16 %v247, %v245
      %v256 = vpack.c.b16 %v248, %v246
      %v297 = vunpack.c.l.b16 %v186
      %v298 = vunpack.c.l.b16 %v187
      %v299 = vunpack.c.l.b16 %v188
      %v300 = vunpack.c.l.b16 %v189
      %v301 = vunpack.c.l.b16 %v190
      %v302 = vunpack.c.l.b16 %v191
      %v303 = vunpack.c.l.b16 %v192
      %v304 = vunpack.c.l.b16 %v193
      %v305 = vunpack.c.l.b16 %v194
      %v306 = vunpack.c.l.b16 %v195
      %v307 = vunpack.c.l.b16 %v196
      %v308 = vunpack.c.l.b16 %v197
      %v309 = vunpack.c.l.b16 %v198
      %v310 = vunpack.c.l.b16 %v199
      %v311 = vunpack.c.l.b16 %v200
      %v312 = vunpack.c.l.b16 %v201
      %v313 = vunpack.c.l.b16 %v202
      %v314 = vunpack.c.l.b16 %v203
      %v315 = vunpack.c.l.b16 %v204
      %v316 = vunpack.c.l.b16 %v205
      %v317 = vunpack.c.l.b16 %v206
      %v318 = vunpack.c.l.b16 %v207
      %v319 = vunpack.c.l.b16 %v208
      %v320 = vunpack.c.l.b16 %v209
      %v321 = vunpack.c.l.b16 %v210
      %v322 = vunpack.c.l.b16 %v211
      %v323 = vunpack.c.l.b16 %v212
      %v324 = vunpack.c.l.b16 %v213
      %v325 = vunpack.c.l.b16 %v214
      %v326 = vunpack.c.l.b16 %v215
      %v327 = vunpack.c.l.b16 %v216
      %v328 = vunpack.c.l.b16 %v217
      %v329 = vpack.c.b16 %v298, %v297
      %v330 = vpack.c.b16 %v300, %v299
      %v331 = vpack.c.b16 %v302, %v301
      %v332 = vpack.c.b16 %v304, %v303
      %v333 = vpack.c.b16 %v306, %v305
      %v334 = vpack.c.b16 %v308, %v307
      %v335 = vpack.c.b16 %v310, %v309
      %v336 = vpack.c.b16 %v312, %v311
      %v337 = vpack.c.b16 %v314, %v313
      %v338 = vpack.c.b16 %v316, %v315
      %v339 = vpack.c.b16 %v318, %v317
      %v340 = vpack.c.b16 %v320, %v319
      %v341 = vpack.c.b16 %v322, %v321
      %v342 = vpack.c.b16 %v324, %v323
      %v343 = vpack.c.b16 %v326, %v325
      %v344 = vpack.c.b16 %v328, %v327
      %361 = vmatprep.subr.bf16.mxu0 0
      %362 = vmatpush1.bf16.msra.mxu0 %v329
      %363 = vmatprep.subr.bf16.mxu0 0
      %364 = vmatpush1.bf16.msra.mxu0 %v330
      %365 = vmatprep.subr.bf16.mxu0 0
      %366 = vmatpush1.bf16.msra.mxu0 %v331
      %367 = vmatprep.subr.bf16.mxu0 0
      %368 = vmatpush1.bf16.msra.mxu0 %v332
      %369 = vmatprep.subr.bf16.mxu0 0
      %370 = vmatpush1.bf16.msra.mxu0 %v333
      %371 = vmatprep.subr.bf16.mxu0 0
      %372 = vmatpush1.bf16.msra.mxu0 %v334
      %373 = vmatprep.subr.bf16.mxu0 0
      %374 = vmatpush1.bf16.msra.mxu0 %v335
      %375 = vmatprep.subr.bf16.mxu0 0
      %376 = vmatpush1.bf16.msra.mxu0 %v336
      %377 = vmatprep.subr.bf16.mxu0 0
      %378 = vmatpush1.bf16.msra.mxu0 %v337
      %379 = vmatprep.subr.bf16.mxu0 0
      %380 = vmatpush1.bf16.msra.mxu0 %v338
      %381 = vmatprep.subr.bf16.mxu0 0
      %382 = vmatpush1.bf16.msra.mxu0 %v339
      %383 = vmatprep.subr.bf16.mxu0 0
      %384 = vmatpush1.bf16.msra.mxu0 %v340
      %385 = vmatprep.subr.bf16.mxu0 0
      %386 = vmatpush1.bf16.msra.mxu0 %v341
      %387 = vmatprep.subr.bf16.mxu0 0
      %388 = vmatpush1.bf16.msra.mxu0 %v342
      %389 = vmatprep.subr.bf16.mxu0 0
      %390 = vmatpush1.bf16.msra.mxu0 %v343
      %391 = vmatprep.subr.bf16.mxu0 0
      %392 = vmatpush1.bf16.msra.mxu0 %v344
      %393 = vmatprep.mubr.bf16.mxu0 %v250
      %394 = vmatmul.mubr.bf16.gmra.mrb[0].mxu0 %v249
      %v395 = vpop.f32.mrb[0].mxu0
      %v396 = vadd.f32 %v223, %v395
      %v397 = vpop.f32.mrb[0].mxu0
      %v398 = vpop.f32.mrb[0].mxu0
      %v399 = vadd.f32 %v223, %v398
      %v400 = vpop.f32.mrb[0].mxu0
      %401 = vmatprep.mubr.bf16.mxu0 %v252
      %402 = vmatmul.mubr.bf16.gmra.mrb[0].mxu0 %v251
      %v403 = vpop.f32.mrb[0].mxu0
      %v404 = vadd.f32 %v223, %v403
      %v405 = vpop.f32.mrb[0].mxu0
      %v406 = vpop.f32.mrb[0].mxu0
      %v407 = vadd.f32 %v223, %v406
      %v408 = vpop.f32.mrb[0].mxu0
      %409 = vmatprep.mubr.bf16.mxu0 %v254
      %410 = vmatmul.mubr.bf16.gmra.mrb[0].mxu0 %v253
      %v411 = vpop.f32.mrb[0].mxu0
      %v412 = vadd.f32 %v223, %v411
      %v413 = vpop.f32.mrb[0].mxu0
      %v414 = vpop.f32.mrb[0].mxu0
      %v415 = vadd.f32 %v223, %v414
      %v416 = vpop.f32.mrb[0].mxu0
      %417 = vmatprep.mubr.bf16.mxu0 %v256
      %418 = vmatmul.mubr.bf16.gmra.mrb[0].mxu0 %v255
      %v419 = vpop.f32.mrb[0].mxu0
      %v420 = vadd.f32 %v223, %v419
      %v421 = vpop.f32.mrb[0].mxu0
      %v422 = vpop.f32.mrb[0].mxu0
      %v423 = vadd.f32 %v223, %v422
      %v424 = vpop.f32.mrb[0].mxu0
      %425 = vdwg.mxu0
      %426 = vst [vmem:[%s175] sm:$0xff] %v396
      %427 = vst [vmem:[%s175 + $0x8] sm:$0xff] %v399
      %428 = vst [vmem:[%s175 + $0x10] sm:$0xff] %v404
      %429 = vst [vmem:[%s175 + $0x18] sm:$0xff] %v407
      %430 = vst [vmem:[%s175 + $0x20] sm:$0xff] %v412
      %431 = vst [vmem:[%s175 + $0x28] sm:$0xff] %v415
      %432 = vst [vmem:[%s175 + $0x30] sm:$0xff] %v420
      %433 = vst [vmem:[%s175 + $0x38] sm:$0xff] %v423
      %s434 = smul.u32 8, %s14
      %p435 = scmp.lt.s32.totalorder %s434, 15
      %s436 = scalar_select %p435, %s434, 15
      %s437 = smul.addr %s436, 8
      %s438 = scalar_lea.vmem %s3, %s437
      // Predicated region
      $region33: #{_lambda_.1} parent=31 // pred_check
        %p439 = pneg %p100
      $region34: #{_lambda_.1} parent=31 // pred_check_branch
        %441 = sbr.rel (%p439) target = $region36
      $region35: #{_lambda_.1} parent=31 // pred_region
        %s442 = smul.u32 8, %s14
      $region36: #{_lambda_.1} parent=31 // pred_fallthru
        _
    $region32: #{_lambda_.1} parent=5 // pred_fallthru
      _
    %p443 = scmp.le.s32.totalorder 2, %s9
    // Predicated region
    $region37: #{_lambda_.1} parent=5 // pred_check
      %p444 = pneg %p443
    $region38: #{_lambda_.1} parent=5 // pred_check_branch
      %446 = sbr.rel (%p444) target = $region40
    $region39: #{_lambda_.1} parent=5 // pred_region
      %s447 = ssub.s32 %s9, 2
      // Predicated region
      $region41: #{_lambda_.1} parent=39 // pred_check
        %p448 = pneg %p106
      $region42: #{_lambda_.1} parent=39 // pred_check_branch
        %450 = sbr.rel (%p448) target = $region44
      $region43: #{_lambda_.1} parent=39 // pred_region
        %s451 = smul.u32 8, %s15
        %p452 = scmp.lt.s32.totalorder %s451, 15
        %s453 = scalar_select %p452, %s451, 15
        %s454 = smul.addr %s453, 8
        %s455 = scalar_lea.vmem %s3, %s454
      $region44: #{_lambda_.1} parent=39 // pred_fallthru
        _
    $region40: #{_lambda_.1} parent=5 // pred_fallthru
      _
  $region6: #{_lambda_.1} parent=0 // loop_footer
    %s13 = sadd.s32 1, %s9
  $region7: #{_lambda_.1} parent=0 // loop_footer_branch
    %8 = sbr.rel target = $region3
  $region8: #{_lambda_.1} parent=0 // loop_exit
    _

</llo_original>
